<compile_context>
chip_gen: v7x
topology: tpu7x:2x2x1
jax: 0.10.0
libtpu: 0.0.40
codegen_flags: <defaults>
</compile_context>

<pallas_src>
import functools

import jax
import jax.numpy as jnp
from jax import lax
from jax.experimental import pallas as pl
from jax.experimental.pallas import tpu as pltpu

LN_EPS = 1e-5
_SUBLANE = 8


def _imageproj_kernel(x_ref, w_ref, s_ref, b_ref, g_ref, beta_ref, o_ref, *, d):
    # x_ref:    (Bp, Din)  f32   image embeddings (VMEM-resident across grid)
    # w_ref:    (Din, TN)  int8  token-tile of projection weight (streams)
    # s_ref:    (1, TN)    f32   per-output-column dequant scale (streams)
    # b_ref:    (1, TN)    f32   projection bias tile (streams)
    # g_ref:    (1, D)     f32   LayerNorm gamma (resident)
    # beta_ref: (1, D)     f32   LayerNorm beta (resident)
    # o_ref:    (Bp, TN)   f32   lane-dense output tile
    tn = o_ref.shape[-1]

    x = x_ref[...].astype(jnp.bfloat16)          # MXU input dtype
    w = w_ref[...].astype(jnp.bfloat16)          # exact: int8 values fit bf16

    # MXU matmul, f32 accumulation.
    y = jnp.dot(x, w, preferred_element_type=jnp.float32)     # (Bp, TN)
    # Dequantize BEFORE LayerNorm statistics (scale changes mean and var).
    y = y * s_ref[...] + b_ref[...]

    g = g_ref[...]                               # (1, D) f32
    beta = beta_ref[...]                         # (1, D) f32

    # Per-token LayerNorm on lane-aligned static slices (tokens per tile is
    # small and static -> unrolled).  Biased variance, eps=1e-5 (torch LN).
    outs = []
    for t in range(tn // d):
        yt = y[:, t * d:(t + 1) * d]             # (Bp, D)
        mean = jnp.mean(yt, axis=-1, keepdims=True)
        diff = yt - mean
        var = jnp.mean(diff * diff, axis=-1, keepdims=True)
        outs.append(diff * lax.rsqrt(var + LN_EPS) * g + beta)

    # Single contiguous lane-dense store for the whole tile.
    o_ref[...] = jnp.concatenate(outs, axis=-1).astype(o_ref.dtype)


def quantize_weight_per_column(w_f32):
    """int8 weight + per-output-column f32 scale (symmetric)."""
    amax = jnp.max(jnp.abs(w_f32), axis=0, keepdims=True)          # (1, TD)
    scale = jnp.where(amax > 0, amax / 127.0, 1.0).astype(jnp.float32)
    w_q = jnp.clip(jnp.round(w_f32 / scale), -127, 127).astype(jnp.int8)
    return w_q, scale


def image_proj_model(image_embeds, w_q, w_scale, b, gamma, beta, *,
                     tokens, block_tokens=None):
    """Forward pass.

    image_embeds: (B, Din)   f32
    w_q:          (Din, T*D) int8   torch Linear weight, transposed, token-major
                                    D-blocks along the last dim (== reshape(-1,T,D))
    w_scale:      (1, T*D)   f32    per-output-column dequant scale
    b:            (1, T*D)   f32    projection bias
    gamma, beta:  (1, D)     f32    LayerNorm affine
    returns:      (B, T, D)  f32
    """
    B, Din = image_embeds.shape
    TD = w_q.shape[1]
    D = TD // tokens

    # Pick tokens-per-tile so the streamed weight block is ~<=4 MiB
    # (double-buffered -> <=8 MiB of VMEM for W on any generation).
    if block_tokens is None:
        budget = 4 * 1024 * 1024
        bt = max(1, min(tokens, budget // max(1, Din * D * w_q.dtype.itemsize)))
        while tokens % bt:
            bt -= 1
        block_tokens = bt
    assert tokens % block_tokens == 0
    TN = block_tokens * D
    grid = (TD // TN,)

    # Pad batch to full sublanes so output stores are unmasked.
    Bp = ((B + _SUBLANE - 1) // _SUBLANE) * _SUBLANE
    x = image_embeds
    if Bp != B:
        x = jnp.pad(x, ((0, Bp - B), (0, 0)))

    kernel = functools.partial(_imageproj_kernel, d=D)
    itemsize = jnp.dtype(w_q.dtype).itemsize
    cost = pl.CostEstimate(
        flops=2 * Bp * Din * TD,
        transcendentals=0,
        bytes_accessed=(Bp * Din * 4 + Din * TD * itemsize
                        + 2 * TD * 4 + 2 * D * 4 + Bp * TD * 4))

    out_flat = pl.pallas_call(
        kernel,
        out_shape=jax.ShapeDtypeStruct((Bp, TD), jnp.float32),
        grid=grid,
        in_specs=[
            pl.BlockSpec((Bp, Din), lambda j: (0, 0)),   # x: resident
            pl.BlockSpec((Din, TN), lambda j: (0, j)),   # W tile: streams
            pl.BlockSpec((1, TN), lambda j: (0, j)),     # scale tile: streams
            pl.BlockSpec((1, TN), lambda j: (0, j)),     # bias tile: streams
            pl.BlockSpec((1, D), lambda j: (0, 0)),      # gamma: resident
            pl.BlockSpec((1, D), lambda j: (0, 0)),      # beta: resident
        ],
        out_specs=pl.BlockSpec((Bp, TN), lambda j: (0, j)),
        compiler_params=pltpu.CompilerParams(
            dimension_semantics=("parallel",)),          # token tiles independent
        cost_estimate=cost,
    )(x, w_q, w_scale, b, gamma, beta)

    # Drop batch padding; reshape to (B, T, D) outside (layout only).
    return out_flat[:B].reshape(B, tokens, D)


def _reference(image_embeds, w_q, w_scale, b, gamma, beta, *, tokens):
    """Pure-JAX reference with torch LN semantics on the same quantized weight."""
    B, _ = image_embeds.shape
    TD = w_q.shape[1]
    D = TD // tokens
    y = jnp.dot(image_embeds.astype(jnp.bfloat16), w_q.astype(jnp.bfloat16),
                preferred_element_type=jnp.float32)
    y = y * w_scale.reshape(TD) + b.reshape(TD)
    y = y.reshape(B, tokens, D)
    mean = jnp.mean(y, axis=-1, keepdims=True)
    var = jnp.mean((y - mean) ** 2, axis=-1, keepdims=True)
    return (y - mean) / jnp.sqrt(var + LN_EPS) * gamma.reshape(D) + beta.reshape(D)


if __name__ == "__main__":
    # Small, TPU-friendly shapes consistent with the module:
    #   clip_embeddings_dim (Din) = 256, cross_attention_dim (D) = 128,
    #   clip_extra_context_tokens (T) = 4, batch (B) = 2.
    B, Din, D, T = 2, 256, 128, 4

    key = jax.random.PRNGKey(0)
    k_x, k_w, k_b, k_g, k_beta = jax.random.split(key, 5)

    image_embeds = jax.random.normal(k_x, (B, Din), dtype=jnp.float32)

    # Linear: out_features = T*D, in_features = Din. Stored pre-transposed as
    # (Din, T*D); column slab t*D:(t+1)*D corresponds to token t (same layout
    # as torch's .reshape(-1, T, D)).
    w_f32 = (jax.random.normal(k_w, (Din, T * D), dtype=jnp.float32)
             * (1.0 / jnp.sqrt(Din)))
    w_q, w_scale = quantize_weight_per_column(w_f32)
    b = jax.random.normal(k_b, (1, T * D), dtype=jnp.float32) * 0.02
    gamma = 1.0 + 0.1 * jax.random.normal(k_g, (1, D), dtype=jnp.float32)
    beta = 0.1 * jax.random.normal(k_beta, (1, D), dtype=jnp.float32)

    # block_tokens=2 -> grid=(2,) so the streamed/pipelined path is exercised
    # even at these tiny demo shapes.
    out = image_proj_model(image_embeds, w_q, w_scale, b, gamma, beta,
                           tokens=T, block_tokens=2)
    out = jax.block_until_ready(out)

    ref = _reference(image_embeds, w_q, w_scale, b, gamma, beta, tokens=T)
    assert out.shape == (B, T, D)
    # Both paths use the same int8->bf16 dequantized weight and bf16 x; the
    # tolerance covers MXU vs XLA summation-order differences only.
    assert jnp.allclose(out, ref, atol=2e-2, rtol=2e-2), "mismatch vs reference"

    print("KERNEL_OK")
</pallas_src>

<mosaic_0001>
module attributes {stable_mosaic.version = 11 : i64} {
  func.func @_imageproj_kernel(%arg0: i32, %arg1: memref<8x256xf32, #tpu.memory_space<vmem>>, %arg2: memref<256x256xi8, #tpu.memory_space<vmem>>, %arg3: memref<1x256xf32, #tpu.memory_space<vmem>>, %arg4: memref<1x256xf32, #tpu.memory_space<vmem>>, %arg5: memref<1x128xf32, #tpu.memory_space<vmem>>, %arg6: memref<1x128xf32, #tpu.memory_space<vmem>>, %arg7: memref<8x256xf32, #tpu.memory_space<vmem>>) attributes {dimension_semantics = [#tpu.dimension_semantics<parallel>], iteration_bounds = array<i64: 2>, scalar_prefetch = 0 : i64, scratch_operands = 0 : i64, tpu.core_type = #tpu.core_type<tc>, window_params = [{pipeline_mode = #tpu.pipeline_mode<synchronous>, transform_indices = @transform_0, window_bounds = array<i64: 8, 256>}, {transform_indices = @transform_1, window_bounds = array<i64: 256, 256>}, {transform_indices = @transform_2, window_bounds = array<i64: 1, 256>}, {transform_indices = @transform_3, window_bounds = array<i64: 1, 256>}, {pipeline_mode = #tpu.pipeline_mode<synchronous>, transform_indices = @transform_4, window_bounds = array<i64: 1, 128>}, {pipeline_mode = #tpu.pipeline_mode<synchronous>, transform_indices = @transform_5, window_bounds = array<i64: 1, 128>}, {transform_indices = @transform_6, window_bounds = array<i64: 8, 256>}]} {
    %c0 = arith.constant 0 : index
    %c0_0 = arith.constant 0 : index
    %0 = vector.load %arg1[%c0, %c0_0] : memref<8x256xf32, #tpu.memory_space<vmem>>, vector<8x256xf32>
    %1 = arith.truncf %0 : vector<8x256xf32> to vector<8x256xbf16>
    %c0_1 = arith.constant 0 : index
    %c0_2 = arith.constant 0 : index
    %2 = vector.load %arg2[%c0_1, %c0_2] : memref<256x256xi8, #tpu.memory_space<vmem>>, vector<256x256xi8>
    %3 = arith.sitofp %2 : vector<256x256xi8> to vector<256x256xbf16>
    %cst = arith.constant dense<0.000000e+00> : vector<8x256xf32>
    %4 = tpu.matmul %1, %3, %cst {dimension_numbers = #tpu.dot_dimension_numbers<[1], [0], [0], [1], [0, 0, 1, 1], [], []>} : vector<8x256xbf16>, vector<256x256xbf16>, vector<8x256xf32> -> vector<8x256xf32>
    %c0_3 = arith.constant 0 : index
    %c0_4 = arith.constant 0 : index
    %5 = vector.load %arg3[%c0_3, %c0_4] : memref<1x256xf32, #tpu.memory_space<vmem>>, vector<1x256xf32>
    %6 = vector.broadcast %5 : vector<1x256xf32> to vector<8x256xf32>
    %7 = arith.mulf %4, %6 : vector<8x256xf32>
    %c0_5 = arith.constant 0 : index
    %c0_6 = arith.constant 0 : index
    %8 = vector.load %arg4[%c0_5, %c0_6] : memref<1x256xf32, #tpu.memory_space<vmem>>, vector<1x256xf32>
    %9 = vector.broadcast %8 : vector<1x256xf32> to vector<8x256xf32>
    %10 = arith.addf %7, %9 : vector<8x256xf32>
    %c0_7 = arith.constant 0 : index
    %c0_8 = arith.constant 0 : index
    %11 = vector.load %arg5[%c0_7, %c0_8] : memref<1x128xf32, #tpu.memory_space<vmem>>, vector<1x128xf32>
    %c0_9 = arith.constant 0 : index
    %c0_10 = arith.constant 0 : index
    %12 = vector.load %arg6[%c0_9, %c0_10] : memref<1x128xf32, #tpu.memory_space<vmem>>, vector<1x128xf32>
    %13 = vector.extract_strided_slice %10 {offsets = [0, 0], sizes = [8, 128], strides = [1, 1]} : vector<8x256xf32> to vector<8x128xf32>
    %cst_11 = arith.constant dense<0.000000e+00> : vector<8xf32>
    %14 = vector.multi_reduction <add>, %13, %cst_11 [1] : vector<8x128xf32> to vector<8xf32>
    %15 = vector.shape_cast %14 : vector<8xf32> to vector<8x1xf32>
    %cst_12 = arith.constant 1.280000e+02 : f32
    %16 = vector.broadcast %cst_12 : f32 to vector<8x1xf32>
    %17 = arith.divf %15, %16 : vector<8x1xf32>
    %18 = vector.broadcast %17 : vector<8x1xf32> to vector<8x128xf32>
    %19 = arith.subf %13, %18 : vector<8x128xf32>
    %20 = arith.mulf %19, %19 : vector<8x128xf32>
    %cst_13 = arith.constant dense<0.000000e+00> : vector<8xf32>
    %21 = vector.multi_reduction <add>, %20, %cst_13 [1] : vector<8x128xf32> to vector<8xf32>
    %22 = vector.shape_cast %21 : vector<8xf32> to vector<8x1xf32>
    %cst_14 = arith.constant 1.280000e+02 : f32
    %23 = vector.broadcast %cst_14 : f32 to vector<8x1xf32>
    %24 = arith.divf %22, %23 : vector<8x1xf32>
    %cst_15 = arith.constant 9.99999974E-6 : f32
    %25 = vector.broadcast %cst_15 : f32 to vector<8x1xf32>
    %26 = arith.addf %24, %25 : vector<8x1xf32>
    %27 = math.rsqrt %26 : vector<8x1xf32>
    %28 = vector.broadcast %27 : vector<8x1xf32> to vector<8x128xf32>
    %29 = arith.mulf %19, %28 : vector<8x128xf32>
    %30 = vector.broadcast %11 : vector<1x128xf32> to vector<8x128xf32>
    %31 = arith.mulf %29, %30 : vector<8x128xf32>
    %32 = vector.broadcast %12 : vector<1x128xf32> to vector<8x128xf32>
    %33 = arith.addf %31, %32 : vector<8x128xf32>
    %34 = vector.extract_strided_slice %10 {offsets = [0, 128], sizes = [8, 128], strides = [1, 1]} : vector<8x256xf32> to vector<8x128xf32>
    %cst_16 = arith.constant dense<0.000000e+00> : vector<8xf32>
    %35 = vector.multi_reduction <add>, %34, %cst_16 [1] : vector<8x128xf32> to vector<8xf32>
    %36 = vector.shape_cast %35 : vector<8xf32> to vector<8x1xf32>
    %cst_17 = arith.constant 1.280000e+02 : f32
    %37 = vector.broadcast %cst_17 : f32 to vector<8x1xf32>
    %38 = arith.divf %36, %37 : vector<8x1xf32>
    %39 = vector.broadcast %38 : vector<8x1xf32> to vector<8x128xf32>
    %40 = arith.subf %34, %39 : vector<8x128xf32>
    %41 = arith.mulf %40, %40 : vector<8x128xf32>
    %cst_18 = arith.constant dense<0.000000e+00> : vector<8xf32>
    %42 = vector.multi_reduction <add>, %41, %cst_18 [1] : vector<8x128xf32> to vector<8xf32>
    %43 = vector.shape_cast %42 : vector<8xf32> to vector<8x1xf32>
    %cst_19 = arith.constant 1.280000e+02 : f32
    %44 = vector.broadcast %cst_19 : f32 to vector<8x1xf32>
    %45 = arith.divf %43, %44 : vector<8x1xf32>
    %cst_20 = arith.constant 9.99999974E-6 : f32
    %46 = vector.broadcast %cst_20 : f32 to vector<8x1xf32>
    %47 = arith.addf %45, %46 : vector<8x1xf32>
    %48 = math.rsqrt %47 : vector<8x1xf32>
    %49 = vector.broadcast %48 : vector<8x1xf32> to vector<8x128xf32>
    %50 = arith.mulf %40, %49 : vector<8x128xf32>
    %51 = vector.broadcast %11 : vector<1x128xf32> to vector<8x128xf32>
    %52 = arith.mulf %50, %51 : vector<8x128xf32>
    %53 = vector.broadcast %12 : vector<1x128xf32> to vector<8x128xf32>
    %54 = arith.addf %52, %53 : vector<8x128xf32>
    %55 = tpu.concatenate %33, %54 in 1 : vector<8x128xf32>, vector<8x128xf32> -> vector<8x256xf32>
    %c0_21 = arith.constant 0 : index
    %c0_22 = arith.constant 0 : index
    %56 = vector.load %arg7[%c0_21, %c0_22] : memref<8x256xf32, #tpu.memory_space<vmem>>, vector<8x256xf32>
    tpu.vector_store %arg7[%c0_21, %c0_22], %55 {strides = array<i32>} : memref<8x256xf32, #tpu.memory_space<vmem>>, vector<8x256xf32>,
    return
  }
  func.func @transform_0(%arg0: i32) -> (i32, i32) {
    %c0_i32 = arith.constant 0 : i32
    %c0_i32_0 = arith.constant 0 : i32
    %c0_i32_1 = arith.constant 0 : i32
    return %c0_i32, %c0_i32_0 : i32, i32
  }
  func.func @transform_1(%arg0: i32) -> (i32, i32) {
    %c0_i32 = arith.constant 0 : i32
    %c0_i32_0 = arith.constant 0 : i32
    return %c0_i32, %arg0 : i32, i32
  }
  func.func @transform_2(%arg0: i32) -> (i32, i32) {
    %c0_i32 = arith.constant 0 : i32
    %c0_i32_0 = arith.constant 0 : i32
    return %c0_i32, %arg0 : i32, i32
  }
  func.func @transform_3(%arg0: i32) -> (i32, i32) {
    %c0_i32 = arith.constant 0 : i32
    %c0_i32_0 = arith.constant 0 : i32
    return %c0_i32, %arg0 : i32, i32
  }
  func.func @transform_4(%arg0: i32) -> (i32, i32) {
    %c0_i32 = arith.constant 0 : i32
    %c0_i32_0 = arith.constant 0 : i32
    %c0_i32_1 = arith.constant 0 : i32
    return %c0_i32, %c0_i32_0 : i32, i32
  }
  func.func @transform_5(%arg0: i32) -> (i32, i32) {
    %c0_i32 = arith.constant 0 : i32
    %c0_i32_0 = arith.constant 0 : i32
    %c0_i32_1 = arith.constant 0 : i32
    return %c0_i32, %c0_i32_0 : i32, i32
  }
  func.func @transform_6(%arg0: i32) -> (i32, i32) {
    %c0_i32 = arith.constant 0 : i32
    %c0_i32_0 = arith.constant 0 : i32
    return %c0_i32, %arg0 : i32, i32
  }
}

</mosaic_0001>

<llo_original>
// kernel: tpu_custom_call.1
$region0: #{tpu_custom_call.1}
  #allocation0 [shape = 'u32[]', space=smem, size = 0x4, offset = 0x4, fixed_abs, tag = 'smem constant byte address 0x4 - core index']
  #allocation1 [shape = 'u32[144,128]{1,0:T(1,128)}', space=vmem, size = 0x12000, scoped, tag = 'internal scratch']
  %s0 = inlined_call_operand.hbm [shape: f32[8,256], index: 0, kind: input, shape index: {}]
  %s1 = inlined_call_operand.hbm [shape: s8[256,512], index: 1, kind: input, shape index: {}]
  %s2 = inlined_call_operand.vmem [shape: f32[1,512], index: 2, kind: input, shape index: {}]
  %s3 = inlined_call_operand.vmem [shape: f32[1,512], index: 3, kind: input, shape index: {}]
  %s4 = inlined_call_operand.vmem [shape: f32[1,128], index: 4, kind: input, shape index: {}]
  %s5 = inlined_call_operand.vmem [shape: f32[1,128], index: 5, kind: input, shape index: {}]
  %s6 = inlined_call_operand.hbm [shape: f32[8,512], index: 6, kind: output, shape index: {}]
  %s7 = sld [smem:[#allocation0]]
  $region65: #{tpu_custom_call.1} parent=0
    _
  %s9 = ssub.s32 1, %s7
  %s10 = scalar_select 0, %s9, %s7
  $region1: #{tpu_custom_call.1} parent=0
    #allocation2 [shape = 'u8[8192]{0}', space=vmem, size = 0x2000, scoped, tag = 'input window, operand 0, single buffered']
    #allocation3 [shape = 's32[2]{0}', space=sflag, size = 0x8, scoped, tag = 'scoped memory for tpu_custom_call.1']
    #allocation4 [shape = 's32[2]{0}', space=sflag, size = 0x8, scoped, tag = 'scoped memory for tpu_custom_call.1']
    #allocation5 [shape = 'u8[131072]{0}', space=vmem, size = 0x20000, scoped, tag = 'input window, operand 1']
    #allocation6 [shape = 's32[2]{0}', space=sflag, size = 0x8, scoped, tag = 'scoped memory for tpu_custom_call.1']
    #allocation7 [shape = 'u8[16384]{0}', space=vmem, size = 0x4000, scoped, tag = 'output window, operand 0']
    %11 = vsyncpa [#allocation3], 0
    %12 = vsyncpa [#allocation6], 0
    %s13 = scalar_lea.sflag [#allocation6], 1
    %14 = vsyncpa %s13, 0
    %15 = vsyncpa [#allocation4], 0
    %s16 = scalar_lea.sflag [#allocation4], 1
    %17 = vsyncpa %s16, 0
    loop: start=0, step=1, limit=4
    $region2: #{tpu_custom_call.1} parent=1 // loop_pre_header
      _
    $region3: #{tpu_custom_call.1} parent=1 // loop_header
      %s19 = sphi 0, %s23
      %p20 = scmp.ge.s32.totalorder %s19, 4
      %s27 = sphi 0, %s27
      %s29 = sphi 0, %s27
      %s30 = sphi 0, %s29
      %s44 = sphi 0, %s30
      %s50 = sphi 0, %s52
      %s53 = sphi 0, %s50
      %s54 = sphi 0, %s53
      %s70 = sphi 0, %s54
      %s76 = sphi 0, %s78
      %s79 = sphi 0, %s76
      %s80 = sphi 0, %s79
      %s96 = sphi 0, %s80
      %s102 = sphi 0, %s104
      %s105 = sphi 0, %s102
      %s106 = sphi 0, %s105
      %s122 = sphi 0, %s106
      %s126 = sphi 0, %s126
      %s128 = sphi 0, %s126
      %s129 = sphi 0, %s128
      %s143 = sphi 0, %s129
      %s147 = sphi 0, %s147
      %s149 = sphi 0, %s147
      %s150 = sphi 0, %s149
      %s164 = sphi 0, %s150
      %s170 = sphi 0, %s172
      %s173 = sphi 0, %s170
      %s174 = sphi 0, %s173
      %s190 = sphi 0, %s174
    $region4: #{tpu_custom_call.1} parent=1 // loop_header_branch
      %22 = sbr.rel (%p20) target = $region8
    $region5: #{tpu_custom_call.1} parent=1 // loop_body
      %s24 = ssub.s32 %s19, 1
      %s25 = ssub.s32 %s19, 2
      %s26 = sadd.s32 %s19, 1
      %s28 = sadd.s32 %s27, 1
      %p31 = scmp.eq.s32.totalorder %s19, 1
      %p32 = scmp.ne.s32.totalorder %s27, %s29
      %p33 = scmp.eq.s32.totalorder %s19, 0
      %p34 = por %p32, %p33
      %p35 = scmp.ne.s32.totalorder %s27, %s29
      %p36 = scmp.eq.s32.totalorder %s24, 1
      %p37 = por %p35, %p36
      %p38 = scmp.ne.s32.totalorder %s29, %s30
      %p39 = scmp.eq.s32.totalorder %s24, 0
      %p40 = por %p38, %p39
      %p41 = scmp.ne.s32.totalorder %s29, %s30
      %p42 = scmp.eq.s32.totalorder %s25, 1
      %p43 = por %p41, %p42
      %p45 = scmp.ne.s32.totalorder %s30, %s44
      %p46 = scmp.eq.s32.totalorder %s25, 0
      %p47 = por %p45, %p46
      %s48 = ssub.s32 %s19, %s26
      %p49 = scmp.eq.s32.totalorder %s48, 0
      %s51 = sadd.s32 %s50, 1
      %s52 = scalar_select %p49, %s50, %s51
      %p55 = pneg %p49
      %p56 = scmp.eq.s32.totalorder %s19, 1
      %p57 = por %p55, %p56
      %p58 = scmp.ne.s32.totalorder %s50, %s53
      %p59 = scmp.eq.s32.totalorder %s19, 0
      %p60 = por %p58, %p59
      %p61 = scmp.ne.s32.totalorder %s50, %s53
      %p62 = scmp.eq.s32.totalorder %s24, 1
      %p63 = por %p61, %p62
      %p64 = scmp.ne.s32.totalorder %s53, %s54
      %p65 = scmp.eq.s32.totalorder %s24, 0
      %p66 = por %p64, %p65
      %p67 = scmp.ne.s32.totalorder %s53, %s54
      %p68 = scmp.eq.s32.totalorder %s25, 1
      %p69 = por %p67, %p68
      %p71 = scmp.ne.s32.totalorder %s54, %s70
      %p72 = scmp.eq.s32.totalorder %s25, 0
      %p73 = por %p71, %p72
      %s74 = ssub.s32 %s19, %s26
      %p75 = scmp.eq.s32.totalorder %s74, 0
      %s77 = sadd.s32 %s76, 1
      %s78 = scalar_select %p75, %s76, %s77
      %p81 = pneg %p75
      %p82 = scmp.eq.s32.totalorder %s19, 1
      %p83 = por %p81, %p82
      %p84 = scmp.ne.s32.totalorder %s76, %s79
      %p85 = scmp.eq.s32.totalorder %s19, 0
      %p86 = por %p84, %p85
      %p87 = scmp.ne.s32.totalorder %s76, %s79
      %p88 = scmp.eq.s32.totalorder %s24, 1
      %p89 = por %p87, %p88
      %p90 = scmp.ne.s32.totalorder %s79, %s80
      %p91 = scmp.eq.s32.totalorder %s24, 0
      %p92 = por %p90, %p91
      %p93 = scmp.ne.s32.totalorder %s79, %s80
      %p94 = scmp.eq.s32.totalorder %s25, 1
      %p95 = por %p93, %p94
      %p97 = scmp.ne.s32.totalorder %s80, %s96
      %p98 = scmp.eq.s32.totalorder %s25, 0
      %p99 = por %p97, %p98
      %s100 = ssub.s32 %s19, %s26
      %p101 = scmp.eq.s32.totalorder %s100, 0
      %s103 = sadd.s32 %s102, 1
      %s104 = scalar_select %p101, %s102, %s103
      %p107 = pneg %p101
      %p108 = scmp.eq.s32.totalorder %s19, 1
      %p109 = por %p107, %p108
      %p110 = scmp.ne.s32.totalorder %s102, %s105
      %p111 = scmp.eq.s32.totalorder %s19, 0
      %p112 = por %p110, %p111
      %p113 = scmp.ne.s32.totalorder %s102, %s105
      %p114 = scmp.eq.s32.totalorder %s24, 1
      %p115 = por %p113, %p114
      %p116 = scmp.ne.s32.totalorder %s105, %s106
      %p117 = scmp.eq.s32.totalorder %s24, 0
      %p118 = por %p116, %p117
      %p119 = scmp.ne.s32.totalorder %s105, %s106
      %p120 = scmp.eq.s32.totalorder %s25, 1
      %p121 = por %p119, %p120
      %p123 = scmp.ne.s32.totalorder %s106, %s122
      %p124 = scmp.eq.s32.totalorder %s25, 0
      %p125 = por %p123, %p124
      %s127 = sadd.s32 %s126, 1
      %p130 = scmp.eq.s32.totalorder %s19, 1
      %p131 = scmp.ne.s32.totalorder %s126, %s128
      %p132 = scmp.eq.s32.totalorder %s19, 0
      %p133 = por %p131, %p132
      %p134 = scmp.ne.s32.totalorder %s126, %s128
      %p135 = scmp.eq.s32.totalorder %s24, 1
      %p136 = por %p134, %p135
      %p137 = scmp.ne.s32.totalorder %s128, %s129
      %p138 = scmp.eq.s32.totalorder %s24, 0
      %p139 = por %p137, %p138
      %p140 = scmp.ne.s32.totalorder %s128, %s129
      %p141 = scmp.eq.s32.totalorder %s25, 1
      %p142 = por %p140, %p141
      %p144 = scmp.ne.s32.totalorder %s129, %s143
      %p145 = scmp.eq.s32.totalorder %s25, 0
      %p146 = por %p144, %p145
      %s148 = sadd.s32 %s147, 1
      %p151 = scmp.eq.s32.totalorder %s19, 1
      %p152 = scmp.ne.s32.totalorder %s147, %s149
      %p153 = scmp.eq.s32.totalorder %s19, 0
      %p154 = por %p152, %p153
      %p155 = scmp.ne.s32.totalorder %s147, %s149
      %p156 = scmp.eq.s32.totalorder %s24, 1
      %p157 = por %p155, %p156
      %p158 = scmp.ne.s32.totalorder %s149, %s150
      %p159 = scmp.eq.s32.totalorder %s24, 0
      %p160 = por %p158, %p159
      %p161 = scmp.ne.s32.totalorder %s149, %s150
      %p162 = scmp.eq.s32.totalorder %s25, 1
      %p163 = por %p161, %p162
      %p165 = scmp.ne.s32.totalorder %s150, %s164
      %p166 = scmp.eq.s32.totalorder %s25, 0
      %p167 = por %p165, %p166
      %s168 = ssub.s32 %s19, %s26
      %p169 = scmp.eq.s32.totalorder %s168, 0
      %s171 = sadd.s32 %s170, 1
      %s172 = scalar_select %p169, %s170, %s171
      %p175 = pneg %p169
      %p176 = scmp.eq.s32.totalorder %s19, 1
      %p177 = por %p175, %p176
      %p178 = scmp.ne.s32.totalorder %s170, %s173
      %p179 = scmp.eq.s32.totalorder %s19, 0
      %p180 = por %p178, %p179
      %p181 = scmp.ne.s32.totalorder %s170, %s173
      %p182 = scmp.eq.s32.totalorder %s24, 1
      %p183 = por %p181, %p182
      %p184 = scmp.ne.s32.totalorder %s173, %s174
      %p185 = scmp.eq.s32.totalorder %s24, 0
      %p186 = por %p184, %p185
      %p187 = scmp.ne.s32.totalorder %s173, %s174
      %p188 = scmp.eq.s32.totalorder %s25, 1
      %p189 = por %p187, %p188
      %p191 = scmp.ne.s32.totalorder %s174, %s190
      %p192 = scmp.eq.s32.totalorder %s25, 0
      %p193 = por %p191, %p192
      %p194 = scmp.le.s32.totalorder 1, %s19
      %p195 = scmp.lt.s32.totalorder %s19, 3
      %p196 = pnand %p194, %p195
      %p197 = pneg %p196
      // Predicated region
      $region9: #{tpu_custom_call.1} parent=5 // pred_check
        _
      $region10: #{tpu_custom_call.1} parent=5 // pred_check_branch
        %199 = sbr.rel (%p196) target = $region12
      $region11: #{tpu_custom_call.1} parent=5 // pred_region
        %s200 = ssub.s32 %s19, 1
        // Predicated region
        $region13: #{tpu_custom_call.1} parent=11 // pred_check
          %p201 = pneg %p40
        $region14: #{tpu_custom_call.1} parent=11 // pred_check_branch
          %203 = sbr.rel (%p201) target = $region16
        $region15: #{tpu_custom_call.1} parent=11 // pred_region
          %s205 = ssub.s32 256, 256
          %206 = vsyncadd [#allocation3], %s205
          %s208 = sshll.u32 [#allocation2], 4
          %s209 = int_to_ptr.vmem [resolvable:$true] %s208
          %211 = dma.hbm_to_vmem [thread:$0]  %s0, 256, %s209, [#allocation3]
        $region16: #{tpu_custom_call.1} parent=11 // pred_fallthru
          _
        // Predicated region
        $region17: #{tpu_custom_call.1} parent=11 // pred_check
          %p212 = pneg %p139
        $region18: #{tpu_custom_call.1} parent=11 // pred_check_branch
          %214 = sbr.rel (%p212) target = $region20
        $region19: #{tpu_custom_call.1} parent=11 // pred_region
          _
        $region20: #{tpu_custom_call.1} parent=11 // pred_fallthru
          _
        // Predicated region
        $region21: #{tpu_custom_call.1} parent=11 // pred_check
          %p215 = pneg %p160
        $region22: #{tpu_custom_call.1} parent=11 // pred_check_branch
          %217 = sbr.rel (%p215) target = $region24
        $region23: #{tpu_custom_call.1} parent=11 // pred_region
          _
        $region24: #{tpu_custom_call.1} parent=11 // pred_fallthru
          _
      $region12: #{tpu_custom_call.1} parent=5 // pred_fallthru
        _
      %p218 = scmp.lt.s32.totalorder %s19, 2
      // Predicated region
      $region25: #{tpu_custom_call.1} parent=5 // pred_check
        %p219 = pneg %p218
      $region26: #{tpu_custom_call.1} parent=5 // pred_check_branch
        %221 = sbr.rel (%p219) target = $region28
      $region27: #{tpu_custom_call.1} parent=5 // pred_region
        // Predicated region
        $region29: #{tpu_custom_call.1} parent=27 // pred_check
          %p222 = pneg %p60
        $region30: #{tpu_custom_call.1} parent=27 // pred_check_branch
          %224 = sbr.rel (%p222) target = $region32
        $region31: #{tpu_custom_call.1} parent=27 // pred_region
          %s225 = sand.u32 %s50, 1
          %s226 = scalar_lea.sflag [#allocation6], %s225
          %s227 = sand.u32 %s50, 1
          %s228 = smul.addr %s227, 128
          %s229 = scalar_lea.vmem [#allocation5], %s228
          %s230 = smul.u32 2, %s19
          %s232 = ssub.s32 2048, 2048
          %233 = vsyncadd %s226, %s232
          %s234 = smul.addr %s230, 128
          %s235 = scalar_lea.hbm %s1, %s234
          %s236 = sshll.u32 %s229, 4
          %s237 = int_to_ptr.vmem [resolvable:$true] %s236
          %242 = dma.hbm_to_vmem [thread:$0]  %s235, 2048, %s237, %s226, 512, 256, 16
        $region32: #{tpu_custom_call.1} parent=27 // pred_fallthru
          _
        // Predicated region
        $region33: #{tpu_custom_call.1} parent=27 // pred_check
          %p243 = pneg %p86
        $region34: #{tpu_custom_call.1} parent=27 // pred_check_branch
          %245 = sbr.rel (%p243) target = $region36
        $region35: #{tpu_custom_call.1} parent=27 // pred_region
          %s246 = smul.u32 2, %s19
          %p247 = scmp.lt.s32.totalorder %s246, 3
          %s248 = scalar_select %p247, %s246, 3
          %s249 = scalar_lea.vmem %s2, %s248
          %s250 = smul.u32 2, %s19
        $region36: #{tpu_custom_call.1} parent=27 // pred_fallthru
          _
        // Predicated region
        $region37: #{tpu_custom_call.1} parent=27 // pred_check
          %p251 = pneg %p112
        $region38: #{tpu_custom_call.1} parent=27 // pred_check_branch
          %253 = sbr.rel (%p251) target = $region40
        $region39: #{tpu_custom_call.1} parent=27 // pred_region
          %s254 = smul.u32 2, %s19
          %p255 = scmp.lt.s32.totalorder %s254, 3
          %s256 = scalar_select %p255, %s254, 3
          %s257 = scalar_lea.vmem %s3, %s256
          %s258 = smul.u32 2, %s19
        $region40: #{tpu_custom_call.1} parent=27 // pred_fallthru
          _
      $region28: #{tpu_custom_call.1} parent=5 // pred_fallthru
        _
      %p259 = scmp.le.s32.totalorder 1, %s19
      %p260 = scmp.lt.s32.totalorder %s19, 3
      %p261 = pnand %p259, %p260
      %p262 = pneg %p261
      // Predicated region
      $region41: #{tpu_custom_call.1} parent=5 // pred_check
        _
      $region42: #{tpu_custom_call.1} parent=5 // pred_check_branch
        %264 = sbr.rel (%p261) target = $region44
      $region43: #{tpu_custom_call.1} parent=5 // pred_region
        %s265 = ssub.s32 %s19, 1
        // Predicated region
        $region45: #{tpu_custom_call.1} parent=43 // pred_check
          %p266 = pneg %p40
        $region46: #{tpu_custom_call.1} parent=43 // pred_check_branch
          %268 = sbr.rel (%p266) target = $region48
        $region47: #{tpu_custom_call.1} parent=43 // pred_region
          %269 = dma.done [#allocation3], 256
        $region48: #{tpu_custom_call.1} parent=43 // pred_fallthru
          _
        %s270 = sand.u32 %s53, 1
        %s271 = scalar_lea.sflag [#allocation6], %s270
        %s272 = sand.u32 %s53, 1
        %s273 = smul.addr %s272, 128
        %s274 = scalar_lea.vmem [#allocation5], %s273
        // Predicated region
        $region49: #{tpu_custom_call.1} parent=43 // pred_check
          %p275 = pneg %p66
        $region50: #{tpu_custom_call.1} parent=43 // pred_check_branch
          %277 = sbr.rel (%p275) target = $region52
        $region51: #{tpu_custom_call.1} parent=43 // pred_region
          %278 = dma.done %s271, 2048
        $region52: #{tpu_custom_call.1} parent=43 // pred_fallthru
          _
        %p279 = pneg %p40
        %p280 = pneg %p37
        %s281 = sand.u32 %s53, 1
        %s282 = scalar_lea.sflag [#allocation6], %s281
        %s283 = sand.u32 %s53, 1
        %s284 = smul.addr %s283, 128
        %s285 = scalar_lea.vmem [#allocation5], %s284
        %p286 = pneg %p66
        %p287 = pneg %p63
        %s288 = smul.u32 2, %s24
        %p289 = scmp.lt.s32.totalorder %s288, 3
        %s290 = scalar_select %p289, %s288, 3
        %s291 = scalar_lea.vmem %s2, %s290
        %p292 = pneg %p92
        %p293 = pneg %p89
        %s294 = smul.u32 2, %s24
        %p295 = scmp.lt.s32.totalorder %s294, 3
        %s296 = scalar_select %p295, %s294, 3
        %s297 = scalar_lea.vmem %s3, %s296
        %p298 = pneg %p118
        %p299 = pneg %p115
        %p300 = pneg %p139
        %p301 = pneg %p136
        %p302 = pneg %p160
        %p303 = pneg %p157
        %p304 = pneg %p186
        %p305 = pneg %p183
        %s306 = sand.u32 %s173, 1
        %s307 = scalar_lea.sflag [#allocation4], %s306
        %s308 = sand.u32 %s173, 1
        %s309 = smul.addr %s308, 16
        %s310 = scalar_lea.vmem [#allocation7], %s309
        %s311 = smul.u32 2, %s24
        %s312 = smul.u32 2, %s24
        %p313 = scmp.lt.s32.totalorder %s312, 3
        %s314 = scalar_select %p313, %s312, 3
        %s315 = scalar_lea.vmem %s2, %s314
        %s316 = smul.u32 2, %s24
        %s317 = smul.u32 2, %s24
        %p318 = scmp.lt.s32.totalorder %s317, 3
        %s319 = scalar_select %p318, %s317, 3
        %s320 = scalar_lea.vmem %s3, %s319
        %s321 = smul.u32 2, %s24
        %s322 = smul.u32 2, %s24
        %v323 = vld [vmem:[#allocation2] sm:$0xff]
        %v324 = vld [vmem:[#allocation2 + $0x8] sm:$0xff]
        %v325 = vpack.c.bf16 %v323, %v323
        %v326 = vpack.c.bf16 %v324, %v324
        %v327 = vld [vmem:[%s274] sm:$0xff]
        %v328 = vld [vmem:[%s274 + $0x8] sm:$0xff]
        %v329 = vld [vmem:[%s274 + $0x10] sm:$0xff]
        %v330 = vld [vmem:[%s274 + $0x18] sm:$0xff]
        %v331 = vld [vmem:[%s274 + $0x20] sm:$0xff]
        %v332 = vld [vmem:[%s274 + $0x28] sm:$0xff]
        %v333 = vld [vmem:[%s274 + $0x30] sm:$0xff]
        %v334 = vld [vmem:[%s274 + $0x38] sm:$0xff]
        %v335 = vld [vmem:[%s274 + $0x40] sm:$0xff]
        %v336 = vld [vmem:[%s274 + $0x48] sm:$0xff]
        %v337 = vld [vmem:[%s274 + $0x50] sm:$0xff]
        %v338 = vld [vmem:[%s274 + $0x58] sm:$0xff]
        %v339 = vld [vmem:[%s274 + $0x60] sm:$0xff]
        %v340 = vld [vmem:[%s274 + $0x68] sm:$0xff]
        %v341 = vld [vmem:[%s274 + $0x70] sm:$0xff]
        %v342 = vld [vmem:[%s274 + $0x78] sm:$0xff]
        %v343 = vunpack.c.l.s8.bf16 %v327
        %v344 = vunpack.c.l.s8.bf16 %v328
        %v345 = vunpack.c.h.s8.bf16 %v327
        %v346 = vunpack.c.h.s8.bf16 %v328
        %v347 = vunpack.c.l.s8.bf16 %v329
        %v348 = vunpack.c.l.s8.bf16 %v330
        %v349 = vunpack.c.h.s8.bf16 %v329
        %v350 = vunpack.c.h.s8.bf16 %v330
        %v351 = vunpack.c.l.s8.bf16 %v331
        %v352 = vunpack.c.l.s8.bf16 %v332
        %v353 = vunpack.c.h.s8.bf16 %v331
        %v354 = vunpack.c.h.s8.bf16 %v332
        %v355 = vunpack.c.l.s8.bf16 %v333
        %v356 = vunpack.c.l.s8.bf16 %v334
        %v357 = vunpack.c.h.s8.bf16 %v333
        %v358 = vunpack.c.h.s8.bf16 %v334
        %v359 = vunpack.c.l.s8.bf16 %v335
        %v360 = vunpack.c.l.s8.bf16 %v336
        %v361 = vunpack.c.h.s8.bf16 %v335
        %v362 = vunpack.c.h.s8.bf16 %v336
        %v363 = vunpack.c.l.s8.bf16 %v337
        %v364 = vunpack.c.l.s8.bf16 %v338
        %v365 = vunpack.c.h.s8.bf16 %v337
        %v366 = vunpack.c.h.s8.bf16 %v338
        %v367 = vunpack.c.l.s8.bf16 %v339
        %v368 = vunpack.c.l.s8.bf16 %v340
        %v369 = vunpack.c.h.s8.bf16 %v339
        %v370 = vunpack.c.h.s8.bf16 %v340
        %v371 = vunpack.c.l.s8.bf16 %v341
        %v372 = vunpack.c.l.s8.bf16 %v342
        %v373 = vunpack.c.h.s8.bf16 %v341
        %v374 = vunpack.c.h.s8.bf16 %v342
        %375 = vmatprep.subr.bf16.mxu0 %v344
        %376 = vmatpush1.bf16.msra.mxu0 %v343
        %377 = vmatprep.subr.bf16.mxu0 %v346
        %378 = vmatpush1.bf16.msra.mxu0 %v345
        %379 = vmatprep.subr.bf16.mxu0 %v348
        %380 = vmatpush1.bf16.msra.mxu0 %v347
        %381 = vmatprep.subr.bf16.mxu0 %v350
        %382 = vmatpush1.bf16.msra.mxu0 %v349
        %383 = vmatprep.subr.bf16.mxu0 %v352
        %384 = vmatpush1.bf16.msra.mxu0 %v351
        %385 = vmatprep.subr.bf16.mxu0 %v354
        %386 = vmatpush1.bf16.msra.mxu0 %v353
        %387 = vmatprep.subr.bf16.mxu0 %v356
        %388 = vmatpush1.bf16.msra.mxu0 %v355
        %389 = vmatprep.subr.bf16.mxu0 %v358
        %390 = vmatpush1.bf16.msra.mxu0 %v357
        %391 = vmatprep.subr.bf16.mxu0 %v360
        %392 = vmatpush1.bf16.msra.mxu0 %v359
        %393 = vmatprep.subr.bf16.mxu0 %v362
        %394 = vmatpush1.bf16.msra.mxu0 %v361
        %395 = vmatprep.subr.bf16.mxu0 %v364
        %396 = vmatpush1.bf16.msra.mxu0 %v363
        %397 = vmatprep.subr.bf16.mxu0 %v366
        %398 = vmatpush1.bf16.msra.mxu0 %v365
        %399 = vmatprep.subr.bf16.mxu0 %v368
        %400 = vmatpush1.bf16.msra.mxu0 %v367
        %401 = vmatprep.subr.bf16.mxu0 %v370
        %402 = vmatpush1.bf16.msra.mxu0 %v369
        %403 = vmatprep.subr.bf16.mxu0 %v372
        %404 = vmatpush1.bf16.msra.mxu0 %v371
        %405 = vmatprep.subr.bf16.mxu0 %v374
        %406 = vmatpush1.bf16.msra.mxu0 %v373
        %407 = vmatprep.mubr.bf16.mxu0 %v326
        %408 = vmatmul.mubr.bf16.gmra.mrb[0].mxu0 %v325
        %v409 = vpop.f32.mrb[0].mxu0
        %v410 = vadd.f32 0.0, %v409
        %v411 = vpop.f32.mrb[0].mxu0
        %v412 = vadd.f32 0.0, %v411
        %v413 = vpop.f32.mrb[0].mxu0
        %v414 = vpop.f32.mrb[0].mxu0
        %415 = vdwg.mxu0
        %v416 = vld [vmem:[%s315] sm:$0x3]
        %v418 = vlaneseq
        %v419 = vshrl.u32 %v418, 7
        %v420 = vsub.s32 0, %v419
        %v421 = vrot.slane %v416, %v420
        %v422 = vlaneseq
        %v423 = vshrl.u32 %v422, 7
        %v424 = vsub.s32 1, %v423
        %v425 = vrot.slane %v416, %v424
        %v428 = vmul.f32 %v410, %v421
        %v429 = vmul.f32 %v412, %v425
        %v430 = vld [vmem:[%s320] sm:$0x3]
        %v432 = vlaneseq
        %v433 = vshrl.u32 %v432, 7
        %v434 = vsub.s32 0, %v433
        %v435 = vrot.slane %v430, %v434
        %v436 = vlaneseq
        %v437 = vshrl.u32 %v436, 7
        %v438 = vsub.s32 1, %v437
        %v439 = vrot.slane %v430, %v438
        %v442 = vadd.f32 %v428, %v435
        %v443 = vadd.f32 %v429, %v439
        %v444 = vld [vmem:[%s4] sm:$0x1]
        %v445 = vld [vmem:[%s5] sm:$0x1]
        %446 = vadd.xlane.f32.xlu0 %v442
        %v447 = vpop.xlane.xlu0 %446
        %v448 = vrcp.pop 128.0
        %v449 = vmul.f32 %v447, %v448
        %v450 = vsub.f32 %v442, %v449
        %v451 = vmul.f32 %v450, %v450
        %452 = vadd.xlane.f32.xlu0 %v451
        %v453 = vpop.xlane.xlu0 %452
        %v454 = vmul.f32 %v453, %v448
        %v455 = vadd.f32 %v454, 1e-05
        %v456 = vrsqrt.pop %v455
        %v457 = vmul.f32 %v450, %v456
        %v459 = vlaneseq
        %v460 = vshrl.u32 %v459, 7
        %v461 = vsub.s32 0, %v460
        %v462 = vrot.slane %v444, %v461
        %v464 = vmul.f32 %v457, %v462
        %v466 = vlaneseq
        %v467 = vshrl.u32 %v466, 7
        %v468 = vsub.s32 0, %v467
        %v469 = vrot.slane %v445, %v468
        %v471 = vadd.f32 %v464, %v469
        %472 = vadd.xlane.f32.xlu0 %v443
        %v473 = vpop.xlane.xlu0 %472
        %v474 = vmul.f32 %v473, %v448
        %v475 = vsub.f32 %v443, %v474
        %v476 = vmul.f32 %v475, %v475
        %477 = vadd.xlane.f32.xlu0 %v476
        %v478 = vpop.xlane.xlu0 %477
        %v479 = vmul.f32 %v478, %v448
        %v480 = vadd.f32 %v479, 1e-05
        %v481 = vrsqrt.pop %v480
        %v482 = vmul.f32 %v475, %v481
        %v483 = vmul.f32 %v482, %v462
        %v484 = vadd.f32 %v483, %v469
        %485 = vst [vmem:[%s310] sm:$0xff] %v471
        %486 = vst [vmem:[%s310 + $0x8] sm:$0xff] %v484
        %s487 = sand.u32 %s173, 1
        %s488 = scalar_lea.sflag [#allocation4], %s487
        %s489 = sand.u32 %s173, 1
        %s490 = smul.addr %s489, 16
        %s491 = scalar_lea.vmem [#allocation7], %s490
        // Predicated region
        $region53: #{tpu_custom_call.1} parent=43 // pred_check
          %p492 = pneg %p183
        $region54: #{tpu_custom_call.1} parent=43 // pred_check_branch
          %494 = sbr.rel (%p492) target = $region56
        $region55: #{tpu_custom_call.1} parent=43 // pred_region
          %s495 = smul.u32 2, %s24
          %s497 = ssub.s32 256, 256
          %498 = vsyncadd %s488, %s497
          %s499 = smul.addr %s495, 128
          %s500 = scalar_lea.hbm %s6, %s499
          %s502 = sshll.u32 %s491, 4
          %s503 = int_to_ptr.vmem [resolvable:$true] %s502
          %505 = dma.vmem_to_hbm [thread:$0]  %s503, 256, %s500, %s488
        $region56: #{tpu_custom_call.1} parent=43 // pred_fallthru
          _
      $region44: #{tpu_custom_call.1} parent=5 // pred_fallthru
        _
      %p506 = scmp.le.s32.totalorder 2, %s19
      // Predicated region
      $region57: #{tpu_custom_call.1} parent=5 // pred_check
        %p507 = pneg %p506
      $region58: #{tpu_custom_call.1} parent=5 // pred_check_branch
        %509 = sbr.rel (%p507) target = $region60
      $region59: #{tpu_custom_call.1} parent=5 // pred_region
        %s510 = ssub.s32 %s19, 2
        // Predicated region
        $region61: #{tpu_custom_call.1} parent=59 // pred_check
          %p511 = pneg %p189
        $region62: #{tpu_custom_call.1} parent=59 // pred_check_branch
          %513 = sbr.rel (%p511) target = $region64
        $region63: #{tpu_custom_call.1} parent=59 // pred_region
          %s514 = sand.u32 %s174, 1
          %s515 = scalar_lea.sflag [#allocation4], %s514
          %s516 = sand.u32 %s174, 1
          %s517 = smul.addr %s516, 16
          %s518 = scalar_lea.vmem [#allocation7], %s517
          %519 = dma.done %s515, 256
        $region64: #{tpu_custom_call.1} parent=59 // pred_fallthru
          _
      $region60: #{tpu_custom_call.1} parent=5 // pred_fallthru
        _
    $region6: #{tpu_custom_call.1} parent=1 // loop_footer
      %s23 = sadd.s32 1, %s19
    $region7: #{tpu_custom_call.1} parent=1 // loop_footer_branch
      %18 = sbr.rel target = $region3
    $region8: #{tpu_custom_call.1} parent=1 // loop_exit
      _
    %520 = vsyncpa [#allocation3], 1
    %s521 = scalar_lea.sflag [#allocation3], 1
    %522 = vsyncpa %s521, 1
    %523 = vsyncpa [#allocation6], 1
    %s524 = scalar_lea.sflag [#allocation6], 1
    %525 = vsyncpa %s524, 1
    %526 = vsyncpa [#allocation4], 1
    %s527 = scalar_lea.sflag [#allocation4], 1
    %528 = vsyncpa %s527, 1

</llo_original>
